<compile_context>
chip_gen: v7x
topology: tpu7x:2x2x1
jax: 0.10.0
libtpu: 0.0.40
codegen_flags: <defaults>
</compile_context>

<pallas_src>
import functools

import jax
import jax.numpy as jnp
from jax.experimental import pallas as pl
from jax.experimental.pallas import tpu as pltpu


# ---------------------------------------------------------------------------
# Kernel bodies (specialized at trace time).
# ---------------------------------------------------------------------------

def _add_full_kernel(base_ref, src_ref, out_ref):
    """interchange_dim == embed_dim: plain elementwise add."""
    out_ref[...] = base_ref[...] + src_ref[...]


def _add_prefix_kernel(base_ref, src_ref, out_ref, *, interchange_dim, src_cols):
    """128-aligned embed: all refs are (tr, src_cols) prefix blocks.

    Columns >= src_cols of the (aliased) output are never DMA'd or written,
    so they keep base's values in HBM.  Only the final 128-lane tile needs
    a mask when interchange_dim is not itself 128-aligned.
    """
    if interchange_dim == src_cols:
        out_ref[...] = base_ref[...] + src_ref[...]
    else:
        body = src_cols - 128  # columns fully inside the interchange prefix
        if body > 0:
            out_ref[:, :body] = base_ref[:, :body] + src_ref[:, :body]
        b_tail = base_ref[:, body:]
        s_tail = src_ref[:, body:]
        col = jax.lax.broadcasted_iota(jnp.int32, b_tail.shape, 1) + body
        out_ref[:, body:] = jnp.where(col < interchange_dim, b_tail + s_tail, b_tail)


def _add_masked_flat_kernel(base_ref, src_ref, out_ref, *, embed_dim,
                            interchange_dim):
    """Lane-dense fallback for non-128-aligned embed dims.

    Blocks are (tr, lane) slabs of the row-major flattened array; the feature
    index is recovered as (flattened index) % embed_dim.  Stores stay
    full-width / unmasked; the extra int ops ride on VPU slack.
    """
    b = base_ref[...]
    s = src_ref[...]
    block_rows, lane = b.shape
    row = jax.lax.broadcasted_iota(jnp.int32, b.shape, 0)
    col = jax.lax.broadcasted_iota(jnp.int32, b.shape, 1)
    flat = (pl.program_id(0) * block_rows + row) * lane + col
    feat = jax.lax.rem(flat, embed_dim)
    out_ref[...] = jnp.where(feat < interchange_dim, b + s, b)


def _add_masked_row_kernel(base_ref, src_ref, out_ref, *, interchange_dim):
    """Last-resort fallback: (tr, embed) blocks with a per-lane mask."""
    b = base_ref[...]
    s = src_ref[...]
    col = jax.lax.broadcasted_iota(jnp.int32, b.shape, b.ndim - 1)
    out_ref[...] = jnp.where(col < interchange_dim, b + s, b)


# ---------------------------------------------------------------------------
# Launch helpers.
# ---------------------------------------------------------------------------

def _round_up(x, m):
    return ((x + m - 1) // m) * m


def _sublane_multiple(itemsize):
    if itemsize >= 4:
        return 8
    if itemsize == 2:
        return 16
    return 32


def _row_tile(rows, row_bytes, itemsize):
    """Row tile giving ~4 MiB per operand block.

    3 arrays x 2 pipeline buffers x 4 MiB = 24 MiB, under the 32 MiB scoped
    VMEM limit (and well under physical VMEM on every generation).  Large
    single-block launches are split into >=2 steps so the 'parallel' grid
    axis can shard across v7x's two TensorCores and the pipeline overlaps.
    """
    sub = _sublane_multiple(itemsize)
    target_bytes = 4 << 20
    tr = max(1, target_bytes // max(1, row_bytes))
    if tr >= rows:
        if rows * row_bytes >= (1 << 20) and rows >= 2 * sub:
            half = _round_up((rows + 1) // 2, sub)
            return min(half, rows)
        return rows
    if tr >= 256:
        tr = (tr // 256) * 256
    else:
        tr = max(sub, (tr // sub) * sub)
    return min(tr, rows)


def _launch(kernel, base2d, src2d, *, block_cols, flops, bytes_accessed):
    rows = base2d.shape[0]
    itemsize = base2d.dtype.itemsize
    tr = _row_tile(rows, block_cols * itemsize, itemsize)
    grid = (pl.cdiv(rows, tr),)
    return pl.pallas_call(
        kernel,
        out_shape=jax.ShapeDtypeStruct(base2d.shape, base2d.dtype),
        grid_spec=pl.GridSpec(
            grid=grid,
            in_specs=[
                pl.BlockSpec((tr, block_cols), lambda i: (i, 0)),
                pl.BlockSpec((tr, block_cols), lambda i: (i, 0)),
            ],
            out_specs=pl.BlockSpec((tr, block_cols), lambda i: (i, 0)),
        ),
        compiler_params=pltpu.CompilerParams(
            dimension_semantics=("parallel",),
            vmem_limit_bytes=32 * 1024 * 1024,
        ),
        # base is overwritten in place (matches PyTorch semantics); XLA
        # inserts a defensive copy when base is not donated, which also
        # preserves any columns the kernel never writes (prefix path).
        input_output_aliases={0: 0},
        cost_estimate=pl.CostEstimate(
            flops=int(flops),
            transcendentals=0,
            bytes_accessed=int(bytes_accessed),
        ),
    )(base2d, src2d)


def addition_intervention(base, source, interchange_dim=None):
    """Pallas implementation of AdditionIntervention.forward(base, source)."""
    assert base.shape == source.shape, "base/source must have matching shapes"
    embed_dim = base.shape[-1]
    if interchange_dim is None:
        interchange_dim = embed_dim  # default set in __init__
    interchange_dim = int(interchange_dim)
    assert 0 < interchange_dim <= embed_dim

    orig_shape = base.shape
    total = 1
    for d in orig_shape:
        total *= d
    itemsize = base.dtype.itemsize

    def _pick_lane():
        for cand in (1024, 512, 256, 128):
            if total % cand == 0:
                return cand
        return None

    if interchange_dim == embed_dim:
        # Full-dim add is purely elementwise: reshape to a lane-dense slab so
        # the output last dim is a large multiple of 128 (unmasked stores).
        lane = _pick_lane() or embed_dim
        rows = total // lane
        out2d = _launch(
            _add_full_kernel,
            base.reshape(rows, lane),
            source.reshape(rows, lane),
            block_cols=lane,
            flops=total,
            bytes_accessed=3 * total * itemsize,
        )
        return out2d.reshape(orig_shape)

    rows = total // embed_dim

    if embed_dim % 128 == 0:
        # Narrowed prefix path: only DMA / rewrite the touched column prefix
        # (rounded up to 128) of base, source AND output.  The untouched base
        # tail is never moved; aliasing keeps it intact in HBM.
        src_cols = min(_round_up(interchange_dim, 128), embed_dim)
        kernel = functools.partial(
            _add_prefix_kernel,
            interchange_dim=interchange_dim,
            src_cols=src_cols,
        )
        out2d = _launch(
            kernel,
            base.reshape(rows, embed_dim),
            source.reshape(rows, embed_dim),
            block_cols=src_cols,
            flops=rows * interchange_dim,
            bytes_accessed=3 * rows * src_cols * itemsize,
        )
        return out2d.reshape(orig_shape)

    # Non-128-aligned / small embed dim: lane-dense flattened slab with the
    # interchange mask recomputed from the flattened element index.
    lane = _pick_lane()
    if lane is not None and total < 2 ** 31:
        flat_rows = total // lane
        kernel = functools.partial(
            _add_masked_flat_kernel,
            embed_dim=embed_dim,
            interchange_dim=interchange_dim,
        )
        out2d = _launch(
            kernel,
            base.reshape(flat_rows, lane),
            source.reshape(flat_rows, lane),
            block_cols=lane,
            flops=rows * interchange_dim,
            bytes_accessed=3 * total * itemsize,
        )
        return out2d.reshape(orig_shape)

    # Last resort (odd totals): full-width (rows, embed) blocks with a mask.
    kernel = functools.partial(
        _add_masked_row_kernel, interchange_dim=interchange_dim
    )
    out2d = _launch(
        kernel,
        base.reshape(rows, embed_dim),
        source.reshape(rows, embed_dim),
        block_cols=embed_dim,
        flops=rows * interchange_dim,
        bytes_accessed=3 * total * itemsize,
    )
    return out2d.reshape(orig_shape)


# ---------------------------------------------------------------------------
# Module wrapper (JAX/Pallas port of the PyTorch AdditionIntervention).
# ---------------------------------------------------------------------------

class AdditionIntervention:
    def __init__(self, embed_dim, **kwargs):
        self.embed_dim = embed_dim
        self.interchange_dim = embed_dim
        self.use_fast = kwargs.get("use_fast", False)
        self.subspace_partition = kwargs.get("subspace_partition", None)
        self.basis_agnostic = True
        self.trainble = False  # matches the (typo'd) PyTorch attribute

    def set_interchange_dim(self, interchange_dim):
        self.interchange_dim = interchange_dim

    def forward(self, base, source, subspaces=None):
        # TODO(synk): subspaces / subspace_partition (scattered index) paths
        # of _do_intervention_by_swap are not implemented; only the default
        # (None) prefix-add path is.
        assert subspaces is None and self.subspace_partition is None
        return addition_intervention(base, source, self.interchange_dim)

    def __call__(self, base, source, subspaces=None):
        return self.forward(base, source, subspaces)

    def __str__(self):
        return f"AdditionIntervention(embed_dim={self.embed_dim})"


if __name__ == "__main__":
    # Small deterministic example: batch=2, seq=8, hidden=32.
    key = jax.random.PRNGKey(0)
    k_base, k_src = jax.random.split(key)
    batch, seq, hidden = 2, 8, 32
    base = jax.random.normal(k_base, (batch, seq, hidden), dtype=jnp.float32)
    source = jax.random.normal(k_src, (batch, seq, hidden), dtype=jnp.float32)

    intervention = AdditionIntervention(embed_dim=hidden)
    out = jax.block_until_ready(intervention(base, source))

    # Full-dim reference: interchange_dim == embed_dim -> plain add.
    ref = base + source
    assert out.shape == base.shape
    assert jnp.allclose(out, ref, atol=1e-6), "full-dim mismatch vs reference"

    # Partial interchange_dim on a non-128-aligned embed dim (lane-dense
    # flattened masked path).
    intervention.set_interchange_dim(16)
    out_partial = jax.block_until_ready(intervention(base, source))
    ref_partial = base.at[..., :16].add(source[..., :16])
    assert jnp.allclose(out_partial, ref_partial, atol=1e-6), "partial-dim mismatch"

    # Partial interchange_dim on a 128-aligned embed dim (narrowed prefix
    # path: only the first 128 columns are DMA'd / written; the tail stays in
    # HBM via output aliasing).
    hidden2 = 256
    base2 = jax.random.normal(k_base, (batch, seq, hidden2), dtype=jnp.float32)
    source2 = jax.random.normal(k_src, (batch, seq, hidden2), dtype=jnp.float32)
    iv2 = AdditionIntervention(embed_dim=hidden2)
    iv2.set_interchange_dim(100)
    out2 = jax.block_until_ready(iv2(base2, source2))
    ref2 = base2.at[..., :100].add(source2[..., :100])
    assert jnp.allclose(out2, ref2, atol=1e-6), "aligned-prefix mismatch"

    # Same config under jit with a non-donated base: locks in preservation of
    # the never-written base tail through XLA's defensive copy of the aliased
    # input.
    jit_fn = jax.jit(lambda b, s: addition_intervention(b, s, 100))
    out2_jit = jax.block_until_ready(jit_fn(base2, source2))
    assert jnp.allclose(out2_jit, ref2, atol=1e-6), "jit aligned-prefix mismatch"

    # Exact 128-multiple interchange_dim (fully unmasked prefix-only path).
    iv2.set_interchange_dim(128)
    out3 = jax.block_until_ready(iv2(base2, source2))
    ref3 = base2.at[..., :128].add(source2[..., :128])
    assert jnp.allclose(out3, ref3, atol=1e-6), "128-aligned prefix mismatch"

    print("KERNEL_OK")
</pallas_src>

<mosaic_0001>
module attributes {stable_mosaic.version = 11 : i64} {
  func.func @_add_full_kernel(%arg0: i32, %arg1: memref<1x512xf32, #tpu.memory_space<vmem>>, %arg2: memref<1x512xf32, #tpu.memory_space<vmem>>, %arg3: memref<1x512xf32, #tpu.memory_space<vmem>>) attributes {dimension_semantics = [#tpu.dimension_semantics<parallel>], iteration_bounds = array<i64: 1>, scalar_prefetch = 0 : i64, scratch_operands = 0 : i64, tpu.core_type = #tpu.core_type<tc>, window_params = [{transform_indices = @transform_0, window_bounds = array<i64: 1, 512>}, {transform_indices = @transform_1, window_bounds = array<i64: 1, 512>}, {transform_indices = @transform_2, window_bounds = array<i64: 1, 512>}]} {
    %c0 = arith.constant 0 : index
    %c0_0 = arith.constant 0 : index
    %0 = vector.load %arg1[%c0, %c0_0] : memref<1x512xf32, #tpu.memory_space<vmem>>, vector<1x512xf32>
    %c0_1 = arith.constant 0 : index
    %c0_2 = arith.constant 0 : index
    %1 = vector.load %arg2[%c0_1, %c0_2] : memref<1x512xf32, #tpu.memory_space<vmem>>, vector<1x512xf32>
    %2 = arith.addf %0, %1 : vector<1x512xf32>
    %c0_3 = arith.constant 0 : index
    %c0_4 = arith.constant 0 : index
    %3 = vector.load %arg3[%c0_3, %c0_4] : memref<1x512xf32, #tpu.memory_space<vmem>>, vector<1x512xf32>
    tpu.vector_store %arg3[%c0_3, %c0_4], %2 {strides = array<i32>} : memref<1x512xf32, #tpu.memory_space<vmem>>, vector<1x512xf32>,
    return
  }
  func.func @transform_0(%arg0: i32) -> (i32, i32) {
    %c0_i32 = arith.constant 0 : i32
    %c0_i32_0 = arith.constant 0 : i32
    return %arg0, %c0_i32 : i32, i32
  }
  func.func @transform_1(%arg0: i32) -> (i32, i32) {
    %c0_i32 = arith.constant 0 : i32
    %c0_i32_0 = arith.constant 0 : i32
    return %arg0, %c0_i32 : i32, i32
  }
  func.func @transform_2(%arg0: i32) -> (i32, i32) {
    %c0_i32 = arith.constant 0 : i32
    %c0_i32_0 = arith.constant 0 : i32
    return %arg0, %c0_i32 : i32, i32
  }
}

</mosaic_0001>

<llo_original>
// kernel: tpu_custom_call.1
$region0: #{tpu_custom_call.1}
  #allocation0 [shape = 'u32[]', space=smem, size = 0x4, offset = 0x4, fixed_abs, tag = 'smem constant byte address 0x4 - core index']
  #allocation1 [shape = 'u32[144,128]{1,0:T(1,128)}', space=vmem, size = 0x12000, scoped, tag = 'internal scratch']
  %s0 = inlined_call_operand.hbm [shape: f32[1,512], index: 0, kind: input, shape index: {}, may-alias: {0,2}]
  %s1 = inlined_call_operand.vmem [shape: f32[1,512], index: 1, kind: input, shape index: {}]
  %s2 = inlined_call_operand.hbm [shape: f32[1,512], index: 2, kind: output, shape index: {}, may-alias: {0,2}]
  %s3 = sld [smem:[#allocation0]]
  $region22: #{tpu_custom_call.1} parent=0
    _
  %s5 = ssub.s32 1, %s3
  %s6 = scalar_select 0, %s5, %s3
  $region1: #{tpu_custom_call.1} parent=0
    #allocation2 [shape = 'u8[2048]{0}', space=vmem, size = 0x800, scoped, tag = 'input window, operand 0, single buffered']
    #allocation3 [shape = 's32[1]{0}', space=sflag, size = 0x4, scoped, tag = 'scoped memory for tpu_custom_call.1']
    #allocation4 [shape = 's32[1]{0}', space=sflag, size = 0x4, scoped, tag = 'scoped memory for tpu_custom_call.1']
    #allocation5 [shape = 'u8[2048]{0}', space=vmem, size = 0x800, scoped, tag = 'output window, operand 0, single buffered']
    %7 = vsyncpa [#allocation3], 0
    %8 = vsyncpa [#allocation4], 0
    // Predicated region
    $region2: #{tpu_custom_call.1} parent=1 // pred_check
      _
    $region3: #{tpu_custom_call.1} parent=1 // pred_check_branch
      %10 = sbr.rel (0) target = $region5
    $region4: #{tpu_custom_call.1} parent=1 // pred_region
      %s12 = ssub.s32 64, 64
      %13 = vsyncadd [#allocation3], %s12
      %s15 = sshll.u32 [#allocation2], 4
      %s16 = int_to_ptr.vmem [resolvable:$true] %s15
      %18 = dma.hbm_to_vmem [thread:$0]  %s0, 64, %s16, [#allocation3]
    $region5: #{tpu_custom_call.1} parent=1 // pred_fallthru
      _
    // Predicated region
    $region6: #{tpu_custom_call.1} parent=1 // pred_check
      _
    $region7: #{tpu_custom_call.1} parent=1 // pred_check_branch
      %20 = sbr.rel (0) target = $region9
    $region8: #{tpu_custom_call.1} parent=1 // pred_region
      _
    $region9: #{tpu_custom_call.1} parent=1 // pred_fallthru
      _
    // Predicated region
    $region10: #{tpu_custom_call.1} parent=1 // pred_check
      _
    $region11: #{tpu_custom_call.1} parent=1 // pred_check_branch
      %22 = sbr.rel (0) target = $region13
    $region12: #{tpu_custom_call.1} parent=1 // pred_region
      %23 = dma.done [#allocation3], 64
    $region13: #{tpu_custom_call.1} parent=1 // pred_fallthru
      _
    %v24 = vld [vmem:[#allocation2] sm:$0xf]
    %v25 = vld [vmem:[%s1] sm:$0xf]
    %v26 = vadd.f32 %v24, %v25
    %v27 = vlaneseq
    %vm28 = vcmp.ge.s32.totalorder %v27, 0
    %vm29 = vcmp.lt.s32.totalorder %v27, 512
    %vm30 = vmand %vm28, %vm29
    %31 = vst.msk [vmem:[#allocation5] sm:$0xf] %vm30, %v26
    // Predicated region
    $region14: #{tpu_custom_call.1} parent=1 // pred_check
      _
    $region15: #{tpu_custom_call.1} parent=1 // pred_check_branch
      %33 = sbr.rel (0) target = $region17
    $region16: #{tpu_custom_call.1} parent=1 // pred_region
      %s35 = ssub.s32 64, 64
      %36 = vsyncadd [#allocation4], %s35
      %s38 = sshll.u32 [#allocation5], 4
      %s39 = int_to_ptr.vmem [resolvable:$true] %s38
      %41 = dma.vmem_to_hbm [thread:$0]  %s39, 64, %s2, [#allocation4]
    $region17: #{tpu_custom_call.1} parent=1 // pred_fallthru
      _
    // Predicated region
    $region18: #{tpu_custom_call.1} parent=1 // pred_check
      _
    $region19: #{tpu_custom_call.1} parent=1 // pred_check_branch
      %43 = sbr.rel (0) target = $region21
    $region20: #{tpu_custom_call.1} parent=1 // pred_region
      %44 = dma.done [#allocation4], 64
    $region21: #{tpu_custom_call.1} parent=1 // pred_fallthru
      _
    %45 = vsyncpa [#allocation3], 1
    %46 = vsyncpa [#allocation4], 1

</llo_original>
